<compile_context>
chip_gen: v6e
topology: v6e:2x2x1
jax: 0.10.0
libtpu: 0.0.40
codegen_flags: <defaults>
</compile_context>

<pallas_src>
import jax
import jax.numpy as jnp
from jax.experimental import pallas as pl
from jax.experimental.pallas import tpu as pltpu


def _pos_enc_kernel(c_ref, w1bd_ref, b1_ref, w2bd_ref, b2_ref, out_ref):
    # c_ref:    (rows, 2*group)  each row holds `group` (x, y) coordinate pairs
    # w1bd_ref: (2*group, 128)   block-diagonal W1 (in, out convention), constant
    # b1_ref:   (1, 128)         b1 tiled `group` times
    # w2bd_ref: (128, 128)       block-diagonal W2, constant
    # b2_ref:   (1, 128)         b2 tiled `group` times
    # out_ref:  (rows, 128)      lane-dense: `group` points x pos_dim per row
    h = jnp.dot(c_ref[...], w1bd_ref[...], preferred_element_type=jnp.float32)
    h = jnp.maximum(h + b1_ref[...], 0.0)                                   # ReLU
    y = jnp.dot(h, w2bd_ref[...], preferred_element_type=jnp.float32) + b2_ref[...]
    out_ref[...] = y.astype(out_ref.dtype)


def _round_up(x, m):
    return -(-x // m) * m


def _choose_tile_n(n, *, align=128, max_tile=32768):
    """Tile size along the point axis: as large as VMEM comfortably allows
    (amortizes the ~0.35 us per-grid-step overhead) and, whenever there is
    enough work, an even number of grid steps so v7x's two TensorCores both
    get a share of the 'parallel' axis."""
    n_aligned = _round_up(max(n, 1), align)
    if n_aligned <= align:
        return align                      # single tiny step; nothing to split
    steps = max(2, _round_up(n_aligned, max_tile) // max_tile)
    if steps % 2:
        steps += 1                        # even step count for megacore sharding
    return _round_up(_round_up(n_aligned, steps) // steps, align)


def positional_encoding(coords, w1, b1, w2, b2, *, tile_n=None):
    """coords: (N, 2) f32; w1: (2, D); b1: (D,); w2: (D, D); b2: (D,) -> (N, D).

    Weights use the (in_features, out_features) convention, i.e. this computes
    relu(coords @ w1 + b1) @ w2 + b2 — identical to the nn.Sequential forward
    with each nn.Linear weight pre-transposed.
    """
    n, two = coords.shape
    assert two == 2
    pos_dim = w1.shape[1]
    # TODO(synk): generalize the point-interleave to pos_dim values that do not
    # divide 128 (would need a padded output feature dim).
    assert 128 % pos_dim == 0, "pos_dim must divide 128 for the lane-dense packing"
    group = 128 // pos_dim            # points packed per 128-lane output row
    align = max(128, 8 * group)       # keep blocks (8, 128)-tileable

    if tile_n is None:
        # Smaller groups pad the input block to 128 lanes in VMEM, so cap tiles.
        tile_n = _choose_tile_n(n, align=align, max_tile=min(32768, 8192 * group))
    assert tile_n % align == 0, "tile_n must keep blocks (8,128)-aligned"

    n_pad = _round_up(n, tile_n)
    coords_p = coords if n_pad == n else jnp.pad(coords, ((0, n_pad - n), (0, 0)))
    # Free row-major reshape: row r = [x_{gr}, y_{gr}, ..., x_{gr+g-1}, y_{gr+g-1}].
    c_packed = coords_p.reshape(n_pad // group, 2 * group)

    # Tiny host-side block-diagonal weight expansion (resident in VMEM as constants).
    eye_g = jnp.eye(group, dtype=w1.dtype)
    w1bd = jnp.kron(eye_g, w1)                       # (2*group, 128)
    w2bd = jnp.kron(eye_g, w2)                       # (128, 128)
    b1t = jnp.tile(b1, group).reshape(1, 128)
    b2t = jnp.tile(b2, group).reshape(1, 128)

    rows = tile_n // group
    grid = (n_pad // tile_n,)
    out_packed = pl.pallas_call(
        _pos_enc_kernel,
        out_shape=jax.ShapeDtypeStruct((n_pad // group, 128), coords.dtype),
        grid_spec=pltpu.PrefetchScalarGridSpec(
            num_scalar_prefetch=0,
            grid=grid,
            in_specs=[
                pl.BlockSpec((rows, 2 * group), lambda i: (i, 0)),   # packed coords
                pl.BlockSpec((2 * group, 128), lambda i: (0, 0)),    # W1 block-diag
                pl.BlockSpec((1, 128), lambda i: (0, 0)),            # b1 tiled
                pl.BlockSpec((128, 128), lambda i: (0, 0)),          # W2 block-diag
                pl.BlockSpec((1, 128), lambda i: (0, 0)),            # b2 tiled
            ],
            out_specs=pl.BlockSpec((rows, 128), lambda i: (i, 0)),   # lane-dense out
        ),
        compiler_params=pltpu.CompilerParams(
            dimension_semantics=("parallel",),
            vmem_limit_bytes=48 * 1024 * 1024,
        ),
    )(c_packed, w1bd, b1t, w2bd, b2t)

    # Free metadata reshape back to the module layout; drop padded points.
    return out_packed.reshape(n_pad, pos_dim)[:n]


def init_params(key, pos_dim):
    """Deterministic init mimicking nn.Linear default (uniform +/- 1/sqrt(fan_in)).
    Weights returned already transposed to (in_features, out_features)."""
    k1, k2, k3, k4 = jax.random.split(key, 4)
    bound1 = 1.0 / jnp.sqrt(2.0)
    bound2 = 1.0 / jnp.sqrt(float(pos_dim))
    w1 = jax.random.uniform(k1, (2, pos_dim), jnp.float32, -bound1, bound1)
    b1 = jax.random.uniform(k2, (pos_dim,), jnp.float32, -bound1, bound1)
    w2 = jax.random.uniform(k3, (pos_dim, pos_dim), jnp.float32, -bound2, bound2)
    b2 = jax.random.uniform(k4, (pos_dim,), jnp.float32, -bound2, bound2)
    return w1, b1, w2, b2


if __name__ == "__main__":
    key = jax.random.PRNGKey(0)
    k_coords, k_params = jax.random.split(key)

    N = 64        # number of 2D points (e.g. patch positions in a bag)
    POS_DIM = 32  # positional embedding dimension

    # Normalized 2D coordinates in [0, 1), shape (N, 2).
    coords = jax.random.uniform(k_coords, (N, 2), jnp.float32)
    w1, b1, w2, b2 = init_params(k_params, POS_DIM)

    out = positional_encoding(coords, w1, b1, w2, b2)
    out = jax.block_until_ready(out)

    # Pure-JAX reference for sanity check.
    ref = jnp.maximum(coords @ w1 + b1, 0.0) @ w2 + b2
    assert out.shape == (N, POS_DIM)
    assert jnp.allclose(out, ref, atol=5e-5, rtol=5e-5)

    # Also exercise padding (N not a multiple of 128) with an even, >1-step grid.
    N2 = 3000
    coords2 = jax.random.uniform(jax.random.PRNGKey(1), (N2, 2), jnp.float32)
    out2 = jax.block_until_ready(positional_encoding(coords2, w1, b1, w2, b2))
    ref2 = jnp.maximum(coords2 @ w1 + b1, 0.0) @ w2 + b2
    assert out2.shape == (N2, POS_DIM)
    assert jnp.allclose(out2, ref2, atol=5e-5, rtol=5e-5)

    print("KERNEL_OK")
</pallas_src>

<mosaic_0001>
module attributes {stable_mosaic.version = 11 : i64} {
  func.func @_pos_enc_kernel(%arg0: i32, %arg1: memref<32x8xf32, #tpu.memory_space<vmem>>, %arg2: memref<8x128xf32, #tpu.memory_space<vmem>>, %arg3: memref<1x128xf32, #tpu.memory_space<vmem>>, %arg4: memref<128x128xf32, #tpu.memory_space<vmem>>, %arg5: memref<1x128xf32, #tpu.memory_space<vmem>>, %arg6: memref<32x128xf32, #tpu.memory_space<vmem>>) attributes {dimension_semantics = [#tpu.dimension_semantics<parallel>], iteration_bounds = array<i64: 1>, scalar_prefetch = 0 : i64, scratch_operands = 0 : i64, tpu.core_type = #tpu.core_type<tc>, window_params = [{transform_indices = @transform_0, window_bounds = array<i64: 32, 8>}, {pipeline_mode = #tpu.pipeline_mode<synchronous>, transform_indices = @transform_1, window_bounds = array<i64: 8, 128>}, {pipeline_mode = #tpu.pipeline_mode<synchronous>, transform_indices = @transform_2, window_bounds = array<i64: 1, 128>}, {pipeline_mode = #tpu.pipeline_mode<synchronous>, transform_indices = @transform_3, window_bounds = array<i64: 128, 128>}, {pipeline_mode = #tpu.pipeline_mode<synchronous>, transform_indices = @transform_4, window_bounds = array<i64: 1, 128>}, {transform_indices = @transform_5, window_bounds = array<i64: 32, 128>}]} {
    %c0 = arith.constant 0 : index
    %c0_0 = arith.constant 0 : index
    %0 = vector.load %arg1[%c0, %c0_0] : memref<32x8xf32, #tpu.memory_space<vmem>>, vector<32x8xf32>
    %c0_1 = arith.constant 0 : index
    %c0_2 = arith.constant 0 : index
    %1 = vector.load %arg2[%c0_1, %c0_2] : memref<8x128xf32, #tpu.memory_space<vmem>>, vector<8x128xf32>
    %cst = arith.constant dense<0.000000e+00> : vector<32x128xf32>
    %2 = tpu.matmul %0, %1, %cst {dimension_numbers = #tpu.dot_dimension_numbers<[1], [0], [0], [1], [0, 0, 1, 1], [], []>} : vector<32x8xf32>, vector<8x128xf32>, vector<32x128xf32> -> vector<32x128xf32>
    %c0_3 = arith.constant 0 : index
    %c0_4 = arith.constant 0 : index
    %3 = vector.load %arg3[%c0_3, %c0_4] : memref<1x128xf32, #tpu.memory_space<vmem>>, vector<1x128xf32>
    %4 = vector.broadcast %3 : vector<1x128xf32> to vector<32x128xf32>
    %5 = arith.addf %2, %4 : vector<32x128xf32>
    %cst_5 = arith.constant 0.000000e+00 : f32
    %6 = vector.broadcast %cst_5 : f32 to vector<32x128xf32>
    %7 = arith.maximumf %5, %6 : vector<32x128xf32>
    %c0_6 = arith.constant 0 : index
    %c0_7 = arith.constant 0 : index
    %8 = vector.load %arg4[%c0_6, %c0_7] : memref<128x128xf32, #tpu.memory_space<vmem>>, vector<128x128xf32>
    %cst_8 = arith.constant dense<0.000000e+00> : vector<32x128xf32>
    %9 = tpu.matmul %7, %8, %cst_8 {dimension_numbers = #tpu.dot_dimension_numbers<[1], [0], [0], [1], [0, 0, 1, 1], [], []>} : vector<32x128xf32>, vector<128x128xf32>, vector<32x128xf32> -> vector<32x128xf32>
    %c0_9 = arith.constant 0 : index
    %c0_10 = arith.constant 0 : index
    %10 = vector.load %arg5[%c0_9, %c0_10] : memref<1x128xf32, #tpu.memory_space<vmem>>, vector<1x128xf32>
    %11 = vector.broadcast %10 : vector<1x128xf32> to vector<32x128xf32>
    %12 = arith.addf %9, %11 : vector<32x128xf32>
    %c0_11 = arith.constant 0 : index
    %c0_12 = arith.constant 0 : index
    %13 = vector.load %arg6[%c0_11, %c0_12] : memref<32x128xf32, #tpu.memory_space<vmem>>, vector<32x128xf32>
    tpu.vector_store %arg6[%c0_11, %c0_12], %12 {strides = array<i32>} : memref<32x128xf32, #tpu.memory_space<vmem>>, vector<32x128xf32>,
    return
  }
  func.func @transform_0(%arg0: i32) -> (i32, i32) {
    %c0_i32 = arith.constant 0 : i32
    %c0_i32_0 = arith.constant 0 : i32
    return %arg0, %c0_i32 : i32, i32
  }
  func.func @transform_1(%arg0: i32) -> (i32, i32) {
    %c0_i32 = arith.constant 0 : i32
    %c0_i32_0 = arith.constant 0 : i32
    %c0_i32_1 = arith.constant 0 : i32
    return %c0_i32, %c0_i32_0 : i32, i32
  }
  func.func @transform_2(%arg0: i32) -> (i32, i32) {
    %c0_i32 = arith.constant 0 : i32
    %c0_i32_0 = arith.constant 0 : i32
    %c0_i32_1 = arith.constant 0 : i32
    return %c0_i32, %c0_i32_0 : i32, i32
  }
  func.func @transform_3(%arg0: i32) -> (i32, i32) {
    %c0_i32 = arith.constant 0 : i32
    %c0_i32_0 = arith.constant 0 : i32
    %c0_i32_1 = arith.constant 0 : i32
    return %c0_i32, %c0_i32_0 : i32, i32
  }
  func.func @transform_4(%arg0: i32) -> (i32, i32) {
    %c0_i32 = arith.constant 0 : i32
    %c0_i32_0 = arith.constant 0 : i32
    %c0_i32_1 = arith.constant 0 : i32
    return %c0_i32, %c0_i32_0 : i32, i32
  }
  func.func @transform_5(%arg0: i32) -> (i32, i32) {
    %c0_i32 = arith.constant 0 : i32
    %c0_i32_0 = arith.constant 0 : i32
    return %arg0, %c0_i32 : i32, i32
  }
}

</mosaic_0001>

<llo_original>
// kernel: tpu_custom_call.1
$region0: #{tpu_custom_call.1}
  #allocation0 [shape = 'u32[]', space=smem, size = 0x4, offset = 0x4, fixed_abs, tag = 'smem constant byte address 0x4 - core index']
  #allocation1 [shape = 'u32[144,128]{1,0:T(1,128)}', space=vmem, size = 0x12000, scoped, tag = 'internal scratch']
  %s0 = inlined_call_operand.vmem [shape: f32[32,8], index: 0, kind: input, shape index: {}]
  %s1 = inlined_call_operand.vmem [shape: f32[8,128], index: 1, kind: input, shape index: {}]
  %s2 = inlined_call_operand.vmem [shape: f32[1,128], index: 2, kind: input, shape index: {}]
  %s3 = inlined_call_operand.hbm [shape: f32[128,128], index: 3, kind: input, shape index: {}]
  %s4 = inlined_call_operand.vmem [shape: f32[1,128], index: 4, kind: input, shape index: {}]
  %s5 = inlined_call_operand.hbm [shape: f32[32,128], index: 5, kind: output, shape index: {}]
  %s6 = sld [smem:[#allocation0]]
  $region34: #{tpu_custom_call.1} parent=0
    _
  %s8 = ssub.s32 1, %s6
  %s9 = scalar_select 0, %s8, %s6
  $region1: #{tpu_custom_call.1} parent=0
    #allocation2 [shape = 'u8[65536]{0}', space=vmem, size = 0x10000, scoped, tag = 'input window, operand 3, single buffered']
    #allocation3 [shape = 's32[1]{0}', space=sflag, size = 0x4, scoped, tag = 'scoped memory for tpu_custom_call.1']
    #allocation4 [shape = 's32[1]{0}', space=sflag, size = 0x4, scoped, tag = 'scoped memory for tpu_custom_call.1']
    #allocation5 [shape = 'u8[16384]{0}', space=vmem, size = 0x4000, scoped, tag = 'output window, operand 0, single buffered']
    %10 = vsyncpa [#allocation3], 0
    %11 = vsyncpa [#allocation4], 0
    // Predicated region
    $region2: #{tpu_custom_call.1} parent=1 // pred_check
      _
    $region3: #{tpu_custom_call.1} parent=1 // pred_check_branch
      %13 = sbr.rel (0) target = $region5
    $region4: #{tpu_custom_call.1} parent=1 // pred_region
      _
    $region5: #{tpu_custom_call.1} parent=1 // pred_fallthru
      _
    // Predicated region
    $region6: #{tpu_custom_call.1} parent=1 // pred_check
      _
    $region7: #{tpu_custom_call.1} parent=1 // pred_check_branch
      %15 = sbr.rel (0) target = $region9
    $region8: #{tpu_custom_call.1} parent=1 // pred_region
      _
    $region9: #{tpu_custom_call.1} parent=1 // pred_fallthru
      _
    // Predicated region
    $region10: #{tpu_custom_call.1} parent=1 // pred_check
      _
    $region11: #{tpu_custom_call.1} parent=1 // pred_check_branch
      %17 = sbr.rel (0) target = $region13
    $region12: #{tpu_custom_call.1} parent=1 // pred_region
      _
    $region13: #{tpu_custom_call.1} parent=1 // pred_fallthru
      _
    // Predicated region
    $region14: #{tpu_custom_call.1} parent=1 // pred_check
      _
    $region15: #{tpu_custom_call.1} parent=1 // pred_check_branch
      %19 = sbr.rel (0) target = $region17
    $region16: #{tpu_custom_call.1} parent=1 // pred_region
      %s21 = ssub.s32 2048, 2048
      %22 = vsyncadd [#allocation3], %s21
      %s23 = sshll.u32 [#allocation2], 4
      %s24 = int_to_ptr.vmem [resolvable:$true] %s23
      %29 = dma.hbm_to_vmem [thread:$0]  %s3, 2048, %s24, [#allocation3], 128, 128, 8
    $region17: #{tpu_custom_call.1} parent=1 // pred_fallthru
      _
    // Predicated region
    $region18: #{tpu_custom_call.1} parent=1 // pred_check
      _
    $region19: #{tpu_custom_call.1} parent=1 // pred_check_branch
      %31 = sbr.rel (0) target = $region21
    $region20: #{tpu_custom_call.1} parent=1 // pred_region
      _
    $region21: #{tpu_custom_call.1} parent=1 // pred_fallthru
      _
    // Predicated region
    $region22: #{tpu_custom_call.1} parent=1 // pred_check
      _
    $region23: #{tpu_custom_call.1} parent=1 // pred_check_branch
      %33 = sbr.rel (0) target = $region25
    $region24: #{tpu_custom_call.1} parent=1 // pred_region
      %34 = dma.done [#allocation3], 2048
    $region25: #{tpu_custom_call.1} parent=1 // pred_fallthru
      _
    %v35 = vld [vmem:[%s0] sm:$0xff]
    %v36 = vld [vmem:[%s0 + $0x8] sm:$0xff]
    %v37 = vld [vmem:[%s0 + $0x10] sm:$0xff]
    %v38 = vld [vmem:[%s0 + $0x18] sm:$0xff]
    %v39 = vld [vmem:[%s1] sm:$0xff]
    %v40 = vld [vmem:[%s2] sm:$0x1]
    %v42 = vlaneseq
    %v43 = vshrl.u32 %v42, 7
    %v44 = vsub.s32 0, %v43
    %v45 = vrot.slane %v40, %v44
    %vm47 = vcmask 64512
    %v49 = vsel %vm47, %v35, 0
    %v52 = vsel %vm47, %v36, 0
    %v55 = vsel %vm47, %v37, 0
    %v58 = vsel %vm47, %v38, 0
    %60 = vmatprep.subr.mxu0 0.0
    %61 = vmatpush1.msra.mxu0 0.0
    %62 = vmatprep.subr.mxu0 0.0
    %63 = vmatpush1.msra.mxu0 0.0
    %64 = vmatprep.subr.mxu0 0.0
    %65 = vmatpush1.msra.mxu0 0.0
    %66 = vmatprep.subr.mxu0 0.0
    %67 = vmatpush1.msra.mxu0 0.0
    %68 = vmatprep.subr.mxu0 0.0
    %69 = vmatpush1.msra.mxu0 0.0
    %70 = vmatprep.subr.mxu0 0.0
    %71 = vmatpush1.msra.mxu0 0.0
    %72 = vmatprep.subr.mxu0 0.0
    %73 = vmatpush1.msra.mxu0 0.0
    %74 = vmatprep.subr.mxu0 0.0
    %75 = vmatpush1.msra.mxu0 0.0
    %76 = vmatprep.subr.mxu0 0.0
    %77 = vmatpush1.msra.mxu0 0.0
    %78 = vmatprep.subr.mxu0 0.0
    %79 = vmatpush1.msra.mxu0 0.0
    %80 = vmatprep.subr.mxu0 0.0
    %81 = vmatpush1.msra.mxu0 0.0
    %82 = vmatprep.subr.mxu0 0.0
    %83 = vmatpush1.msra.mxu0 0.0
    %84 = vmatprep.subr.mxu0 0.0
    %85 = vmatpush1.msra.mxu0 0.0
    %86 = vmatprep.subr.mxu0 0.0
    %87 = vmatpush1.msra.mxu0 0.0
    %88 = vmatprep.subr.mxu0 0.0
    %89 = vmatpush1.msra.mxu0 0.0
    %90 = vmatprep.subr.mxu0 0.0
    %91 = vmatpush1.msra.mxu0 %v39
    %92 = vmatprep.subr.mxu0 0.0
    %93 = vmatpush2.msra.mxu0 0.0
    %94 = vmatprep.subr.mxu0 0.0
    %95 = vmatpush2.msra.mxu0 0.0
    %96 = vmatprep.subr.mxu0 0.0
    %97 = vmatpush2.msra.mxu0 0.0
    %98 = vmatprep.subr.mxu0 0.0
    %99 = vmatpush2.msra.mxu0 0.0
    %100 = vmatprep.subr.mxu0 0.0
    %101 = vmatpush2.msra.mxu0 0.0
    %102 = vmatprep.subr.mxu0 0.0
    %103 = vmatpush2.msra.mxu0 0.0
    %104 = vmatprep.subr.mxu0 0.0
    %105 = vmatpush2.msra.mxu0 0.0
    %106 = vmatprep.subr.mxu0 0.0
    %107 = vmatpush2.msra.mxu0 0.0
    %108 = vmatprep.subr.mxu0 0.0
    %109 = vmatpush2.msra.mxu0 0.0
    %110 = vmatprep.subr.mxu0 0.0
    %111 = vmatpush2.msra.mxu0 0.0
    %112 = vmatprep.subr.mxu0 0.0
    %113 = vmatpush2.msra.mxu0 0.0
    %114 = vmatprep.subr.mxu0 0.0
    %115 = vmatpush2.msra.mxu0 0.0
    %116 = vmatprep.subr.mxu0 0.0
    %117 = vmatpush2.msra.mxu0 0.0
    %118 = vmatprep.subr.mxu0 0.0
    %119 = vmatpush2.msra.mxu0 0.0
    %120 = vmatprep.subr.mxu0 0.0
    %121 = vmatpush2.msra.mxu0 0.0
    %122 = vmatprep.subr.mxu0 0.0
    %123 = vmatpush2.msra.mxu0 0.0
    %124 = vmatprep.mubr.f32.mxu0 0.0
    %125 = vmatmul.mubr.f32.gmra.mxu0 %v49
    %v126 = vpop.f32.mrf.mxu0
    %v127 = vadd.f32 %v45, %v126
    %v128 = vpop.f32.mrf.mxu0
    %129 = vmatprep.mubr.f32.mxu0 0.0
    %130 = vmatmul.mubr.f32.gmra.mxu0 %v52
    %v131 = vpop.f32.mrf.mxu0
    %v132 = vadd.f32 %v45, %v131
    %v133 = vpop.f32.mrf.mxu0
    %134 = vmatprep.mubr.f32.mxu0 0.0
    %135 = vmatmul.mubr.f32.gmra.mxu0 %v55
    %v136 = vpop.f32.mrf.mxu0
    %v137 = vadd.f32 %v45, %v136
    %v138 = vpop.f32.mrf.mxu0
    %139 = vmatprep.mubr.f32.mxu0 0.0
    %140 = vmatmul.mubr.f32.gmra.mxu0 %v58
    %v141 = vpop.f32.mrf.mxu0
    %v142 = vadd.f32 %v45, %v141
    %v143 = vpop.f32.mrf.mxu0
    %144 = vdwg.mxu0
    %v145 = vmax.f32 %v127, 0.0
    %v146 = vmax.f32 %v132, 0.0
    %v147 = vmax.f32 %v137, 0.0
    %v148 = vmax.f32 %v142, 0.0
    %v149 = vld [vmem:[#allocation2] sm:$0xff]
    %v150 = vld [vmem:[#allocation2 + $0x8] sm:$0xff]
    %v151 = vld [vmem:[#allocation2 + $0x10] sm:$0xff]
    %v152 = vld [vmem:[#allocation2 + $0x18] sm:$0xff]
    %v153 = vld [vmem:[#allocation2 + $0x20] sm:$0xff]
    %v154 = vld [vmem:[#allocation2 + $0x28] sm:$0xff]
    %v155 = vld [vmem:[#allocation2 + $0x30] sm:$0xff]
    %v156 = vld [vmem:[#allocation2 + $0x38] sm:$0xff]
    %v157 = vld [vmem:[#allocation2 + $0x40] sm:$0xff]
    %v158 = vld [vmem:[#allocation2 + $0x48] sm:$0xff]
    %v159 = vld [vmem:[#allocation2 + $0x50] sm:$0xff]
    %v160 = vld [vmem:[#allocation2 + $0x58] sm:$0xff]
    %v161 = vld [vmem:[#allocation2 + $0x60] sm:$0xff]
    %v162 = vld [vmem:[#allocation2 + $0x68] sm:$0xff]
    %v163 = vld [vmem:[#allocation2 + $0x70] sm:$0xff]
    %v164 = vld [vmem:[#allocation2 + $0x78] sm:$0xff]
    %v165 = vld [vmem:[%s4] sm:$0x1]
    %v167 = vlaneseq
    %v168 = vshrl.u32 %v167, 7
    %v169 = vsub.s32 0, %v168
    %v170 = vrot.slane %v165, %v169
    %172 = vmatprep.subr.mxu0 0.0
    %173 = vmatpush1.msra.mxu0 %v164
    %174 = vmatprep.subr.mxu0 0.0
    %175 = vmatpush1.msra.mxu0 %v163
    %176 = vmatprep.subr.mxu0 0.0
    %177 = vmatpush1.msra.mxu0 %v162
    %178 = vmatprep.subr.mxu0 0.0
    %179 = vmatpush1.msra.mxu0 %v161
    %180 = vmatprep.subr.mxu0 0.0
    %181 = vmatpush1.msra.mxu0 %v160
    %182 = vmatprep.subr.mxu0 0.0
    %183 = vmatpush1.msra.mxu0 %v159
    %184 = vmatprep.subr.mxu0 0.0
    %185 = vmatpush1.msra.mxu0 %v158
    %186 = vmatprep.subr.mxu0 0.0
    %187 = vmatpush1.msra.mxu0 %v157
    %188 = vmatprep.subr.mxu0 0.0
    %189 = vmatpush1.msra.mxu0 %v156
    %190 = vmatprep.subr.mxu0 0.0
    %191 = vmatpush1.msra.mxu0 %v155
    %192 = vmatprep.subr.mxu0 0.0
    %193 = vmatpush1.msra.mxu0 %v154
    %194 = vmatprep.subr.mxu0 0.0
    %195 = vmatpush1.msra.mxu0 %v153
    %196 = vmatprep.subr.mxu0 0.0
    %197 = vmatpush1.msra.mxu0 %v152
    %198 = vmatprep.subr.mxu0 0.0
    %199 = vmatpush1.msra.mxu0 %v151
    %200 = vmatprep.subr.mxu0 0.0
    %201 = vmatpush1.msra.mxu0 %v150
    %202 = vmatprep.subr.mxu0 0.0
    %203 = vmatpush1.msra.mxu0 %v149
    %204 = vmatprep.subr.mxu0 0.0
    %205 = vmatpush2.msra.mxu0 0.0
    %206 = vmatprep.subr.mxu0 0.0
    %207 = vmatpush2.msra.mxu0 0.0
    %208 = vmatprep.subr.mxu0 0.0
    %209 = vmatpush2.msra.mxu0 0.0
    %210 = vmatprep.subr.mxu0 0.0
    %211 = vmatpush2.msra.mxu0 0.0
    %212 = vmatprep.subr.mxu0 0.0
    %213 = vmatpush2.msra.mxu0 0.0
    %214 = vmatprep.subr.mxu0 0.0
    %215 = vmatpush2.msra.mxu0 0.0
    %216 = vmatprep.subr.mxu0 0.0
    %217 = vmatpush2.msra.mxu0 0.0
    %218 = vmatprep.subr.mxu0 0.0
    %219 = vmatpush2.msra.mxu0 0.0
    %220 = vmatprep.subr.mxu0 0.0
    %221 = vmatpush2.msra.mxu0 0.0
    %222 = vmatprep.subr.mxu0 0.0
    %223 = vmatpush2.msra.mxu0 0.0
    %224 = vmatprep.subr.mxu0 0.0
    %225 = vmatpush2.msra.mxu0 0.0
    %226 = vmatprep.subr.mxu0 0.0
    %227 = vmatpush2.msra.mxu0 0.0
    %228 = vmatprep.subr.mxu0 0.0
    %229 = vmatpush2.msra.mxu0 0.0
    %230 = vmatprep.subr.mxu0 0.0
    %231 = vmatpush2.msra.mxu0 0.0
    %232 = vmatprep.subr.mxu0 0.0
    %233 = vmatpush2.msra.mxu0 0.0
    %234 = vmatprep.subr.mxu0 0.0
    %235 = vmatpush2.msra.mxu0 0.0
    %236 = vmatprep.mubr.f32.mxu0 0.0
    %237 = vmatmul.mubr.f32.gmra.mxu0 %v145
    %v238 = vpop.f32.mrf.mxu0
    %v239 = vadd.f32 %v170, %v238
    %v240 = vpop.f32.mrf.mxu0
    %241 = vmatprep.mubr.f32.mxu0 0.0
    %242 = vmatmul.mubr.f32.gmra.mxu0 %v146
    %v243 = vpop.f32.mrf.mxu0
    %v244 = vadd.f32 %v170, %v243
    %v245 = vpop.f32.mrf.mxu0
    %246 = vmatprep.mubr.f32.mxu0 0.0
    %247 = vmatmul.mubr.f32.gmra.mxu0 %v147
    %v248 = vpop.f32.mrf.mxu0
    %v249 = vadd.f32 %v170, %v248
    %v250 = vpop.f32.mrf.mxu0
    %251 = vmatprep.mubr.f32.mxu0 0.0
    %252 = vmatmul.mubr.f32.gmra.mxu0 %v148
    %v253 = vpop.f32.mrf.mxu0
    %v254 = vadd.f32 %v170, %v253
    %v255 = vpop.f32.mrf.mxu0
    %256 = vdwg.mxu0
    %257 = vst [vmem:[#allocation5] sm:$0xff] %v239
    %258 = vst [vmem:[#allocation5 + $0x8] sm:$0xff] %v244
    %259 = vst [vmem:[#allocation5 + $0x10] sm:$0xff] %v249
    %260 = vst [vmem:[#allocation5 + $0x18] sm:$0xff] %v254
    // Predicated region
    $region26: #{tpu_custom_call.1} parent=1 // pred_check
      _
    $region27: #{tpu_custom_call.1} parent=1 // pred_check_branch
      %262 = sbr.rel (0) target = $region29
    $region28: #{tpu_custom_call.1} parent=1 // pred_region
      %s264 = ssub.s32 512, 512
      %265 = vsyncadd [#allocation4], %s264
      %s266 = sshll.u32 [#allocation5], 4
      %s267 = int_to_ptr.vmem [resolvable:$true] %s266
      %272 = dma.vmem_to_hbm [thread:$0]  %s267, 512, %s5, [#allocation4], 128, 128, 8
    $region29: #{tpu_custom_call.1} parent=1 // pred_fallthru
      _
    // Predicated region
    $region30: #{tpu_custom_call.1} parent=1 // pred_check
      _
    $region31: #{tpu_custom_call.1} parent=1 // pred_check_branch
      %274 = sbr.rel (0) target = $region33
    $region32: #{tpu_custom_call.1} parent=1 // pred_region
      %275 = dma.done [#allocation4], 512
    $region33: #{tpu_custom_call.1} parent=1 // pred_fallthru
      _
    %276 = vsyncpa [#allocation3], 1
    %277 = vsyncpa [#allocation4], 1

</llo_original>
